<compile_context>
chip_gen: v6e
topology: v6e:2x2x1
jax: 0.10.0
libtpu: 0.0.40
codegen_flags: <defaults>
</compile_context>

<pallas_src>
import jax
import jax.numpy as jnp
from jax import lax
from jax.experimental import pallas as pl
from jax.experimental.pallas import tpu as pltpu


_VMEM_LIMIT_BYTES = 32 * 1024 * 1024       # safe scoped limit on v5e / v6e / v7x
_BLOCK_VMEM_BUDGET = 20 * 1024 * 1024      # target for double-buffered in+out blocks
_MIN_NODES_FOR_TC_SPLIT = 4096             # only force >=2 grid steps for big N


def _round_up(x: int, m: int) -> int:
    return ((x + m - 1) // m) * m


def _one_hot_node_major_kernel(types_ref, out_ref):
    # types_ref: (blk, 1) int32 ; out_ref: (blk, num_types) out_dtype
    # out[n, t] = (types[n] == t) -- VPU compare + cast, single HBM write of [N, num_types].
    blk, num_types = out_ref.shape
    class_ids = lax.broadcasted_iota(jnp.int32, (blk, num_types), 1)
    out_ref[...] = (types_ref[...] == class_ids).astype(out_ref.dtype)


def _one_hot_type_major_kernel(types_ref, out_ref):
    # types_ref: (1, blk) int32 ; out_ref: (num_types, blk) out_dtype
    # Lane-dense: nodes live on the 128-lane axis, every store is full-width.
    num_types, blk = out_ref.shape
    class_ids = lax.broadcasted_iota(jnp.int32, (num_types, blk), 0)
    out_ref[...] = (types_ref[...] == class_ids).astype(out_ref.dtype)


def _choose_block_nodes(n: int, num_types: int, out_dtype, node_major: bool,
                        block_vmem_budget: int) -> int:
    """Pick the node-axis block size from the per-node VMEM footprint of the blocks."""
    out_itemsize = jnp.dtype(out_dtype).itemsize
    if node_major:
        # VMEM blocks pad the minor (lane) dim to 128:
        #   input (blk, 1) int32     -> 128 * 4 B / node
        #   output (blk, num_types)  -> round_up(num_types, 128) * itemsize / node
        per_node = 128 * 4 + _round_up(num_types, 128) * out_itemsize
        align = 8           # node axis sits on sublanes
    else:
        # Lane-dense: nodes on lanes, sublane dim pads to 8:
        #   input (1, blk) int32     -> 8 * 4 B / node
        #   output (num_types, blk)  -> round_up(num_types, 8) * itemsize / node
        per_node = 8 * 4 + _round_up(num_types, 8) * out_itemsize
        align = 128         # node axis sits on lanes

    if n <= align:
        return n            # single block equal to the full node dim (always legal)

    blk = (block_vmem_budget // (2 * per_node)) // align * align   # x2: double buffering
    blk = max(align, blk)
    blk = min(blk, (n // align) * align)    # never larger than the array's node dim

    # If one block would still cover a large problem, split it so the "parallel" grid
    # axis has >= 2 steps and both v7x TensorCores get work.
    if n >= _MIN_NODES_FOR_TC_SPLIT and pl.cdiv(n, blk) < 2:
        blk = _round_up(pl.cdiv(n, 2), align)
    return blk


def one_hot_atom_encoding(node_types: jax.Array,
                          num_types: int,
                          out_dtype=jnp.float32,
                          set_features: bool = True,
                          node_major: bool = True,
                          block_vmem_budget: int = _BLOCK_VMEM_BUDGET):
    """Pallas equivalent of OneHotAtomEncoding.forward.

    node_types: int array [N] or [N, 1] (trailing dim squeezed, as in torch).
    node_major=True  -> returns the module's [N, num_types] layout, written directly
                        by the kernel (no separate transpose pass).
    node_major=False -> returns the lane-dense (num_types, N) layout for consumers that
                        fold the transpose into their own contraction.
    Returns (node_attrs, node_features); node_features is the SAME array as node_attrs
    when set_features=True (matching the torch module's aliasing), else None.
    """
    if node_types.ndim == 2 and node_types.shape[-1] == 1:
        node_types = node_types[..., 0]                   # .squeeze(-1)
    if node_types.ndim != 1:
        raise ValueError(f"node_types must be [N] or [N, 1], got {node_types.shape}")
    n = int(node_types.shape[0])

    if n == 0:
        shape = (0, num_types) if node_major else (num_types, 0)
        one_hot = jnp.zeros(shape, out_dtype)
        return one_hot, (one_hot if set_features else None)

    out_itemsize = jnp.dtype(out_dtype).itemsize
    blk = _choose_block_nodes(n, num_types, out_dtype, node_major, block_vmem_budget)
    grid = (pl.cdiv(n, blk),)
    types = node_types.astype(jnp.int32)

    cost = pl.CostEstimate(
        flops=n * num_types,                              # VPU compares
        transcendentals=0,
        bytes_accessed=n * 4 + n * num_types * out_itemsize,
    )
    cparams = pltpu.CompilerParams(
        dimension_semantics=("parallel",),
        vmem_limit_bytes=_VMEM_LIMIT_BYTES,
    )

    if node_major:
        one_hot = pl.pallas_call(
            _one_hot_node_major_kernel,
            out_shape=jax.ShapeDtypeStruct((n, num_types), out_dtype),
            grid=grid,
            in_specs=[pl.BlockSpec((blk, 1), lambda i: (i, 0))],
            out_specs=pl.BlockSpec((blk, num_types), lambda i: (i, 0)),
            compiler_params=cparams,
            cost_estimate=cost,
        )(types.reshape(n, 1))
    else:
        one_hot = pl.pallas_call(
            _one_hot_type_major_kernel,
            out_shape=jax.ShapeDtypeStruct((num_types, n), out_dtype),
            grid=grid,
            in_specs=[pl.BlockSpec((1, blk), lambda i: (0, i))],
            out_specs=pl.BlockSpec((num_types, blk), lambda i: (0, i)),
            compiler_params=cparams,
            cost_estimate=cost,
        )(types.reshape(1, n))

    if not set_features:
        return one_hot, None
    return one_hot, one_hot                               # same array (aliased)


if __name__ == "__main__":
    key = jax.random.PRNGKey(0)
    num_types = 5
    n_nodes = 16

    k_t, k_p = jax.random.split(key)
    # Discrete atom types in [0, num_types), stored as [N, 1] like AtomicDataDict.
    node_types = jax.random.randint(k_t, (n_nodes, 1), 0, num_types, dtype=jnp.int32)
    # Positions only determine the output dtype in the reference module.
    pos = jax.random.normal(k_p, (n_nodes, 3), dtype=jnp.float32)

    ref = jax.nn.one_hot(node_types[:, 0], num_types, dtype=pos.dtype)

    # Default path: [N, num_types] written directly by the kernel (no transpose pass).
    node_attrs, node_features = one_hot_atom_encoding(
        node_types, num_types, out_dtype=pos.dtype, set_features=True)
    node_attrs = jax.block_until_ready(node_attrs)
    assert node_attrs.shape == (n_nodes, num_types)
    assert node_attrs.dtype == pos.dtype
    assert jnp.array_equal(node_attrs, ref)
    assert node_features is node_attrs                    # same tensor, like torch
    assert jnp.array_equal(node_features, ref)

    # set_features=False path: no features output produced.
    attrs_only, feats_none = one_hot_atom_encoding(
        node_types, num_types, out_dtype=pos.dtype, set_features=False)
    attrs_only = jax.block_until_ready(attrs_only)
    assert feats_none is None
    assert jnp.array_equal(attrs_only, ref)

    # Ragged N (not a multiple of the sublane count): exercises the cdiv grid with a
    # masked last block; no padded rows appear in the returned array.
    n_ragged = 13
    t_ragged = node_types[:n_ragged]
    attrs_r, _ = one_hot_atom_encoding(t_ragged, num_types, out_dtype=pos.dtype)
    attrs_r = jax.block_until_ready(attrs_r)
    assert attrs_r.shape == (n_ragged, num_types)
    assert jnp.array_equal(
        attrs_r, jax.nn.one_hot(t_ragged[:, 0], num_types, dtype=pos.dtype))

    # Lane-dense (num_types, N) layout for consumers that fuse the transpose downstream.
    attrs_t, feats_t = one_hot_atom_encoding(
        node_types, num_types, out_dtype=pos.dtype, node_major=False)
    attrs_t = jax.block_until_ready(attrs_t)
    assert attrs_t.shape == (num_types, n_nodes)
    assert feats_t is attrs_t
    assert jnp.array_equal(attrs_t.T, ref)                # transpose only in this test

    print("KERNEL_OK")
</pallas_src>

<mosaic_0001>
module attributes {stable_mosaic.version = 11 : i64} {
  func.func @_one_hot_node_major_kernel(%arg0: i32, %arg1: memref<16x1xi32, #tpu.memory_space<vmem>>, %arg2: memref<16x5xf32, #tpu.memory_space<vmem>>) attributes {dimension_semantics = [#tpu.dimension_semantics<parallel>], iteration_bounds = array<i64: 1>, scalar_prefetch = 0 : i64, scratch_operands = 0 : i64, tpu.core_type = #tpu.core_type<tc>, window_params = [{transform_indices = @transform_0, window_bounds = array<i64: 16, 1>}, {transform_indices = @transform_1, window_bounds = array<i64: 16, 5>}]} {
    %0 = tpu.iota {dimensions = array<i32: 1>} : vector<16x5xi32>
    %c0 = arith.constant 0 : index
    %c0_0 = arith.constant 0 : index
    %1 = vector.load %arg1[%c0, %c0_0] : memref<16x1xi32, #tpu.memory_space<vmem>>, vector<16x1xi32>
    %2 = vector.broadcast %1 : vector<16x1xi32> to vector<16x5xi32>
    %3 = arith.cmpi eq, %2, %0 : vector<16x5xi32>
    %4 = arith.extui %3 : vector<16x5xi1> to vector<16x5xi32>
    %5 = arith.sitofp %4 : vector<16x5xi32> to vector<16x5xf32>
    %c0_1 = arith.constant 0 : index
    %c0_2 = arith.constant 0 : index
    %6 = vector.load %arg2[%c0_1, %c0_2] : memref<16x5xf32, #tpu.memory_space<vmem>>, vector<16x5xf32>
    tpu.vector_store %arg2[%c0_1, %c0_2], %5 {strides = array<i32>} : memref<16x5xf32, #tpu.memory_space<vmem>>, vector<16x5xf32>,
    return
  }
  func.func @transform_0(%arg0: i32) -> (i32, i32) {
    %c0_i32 = arith.constant 0 : i32
    %c0_i32_0 = arith.constant 0 : i32
    return %arg0, %c0_i32 : i32, i32
  }
  func.func @transform_1(%arg0: i32) -> (i32, i32) {
    %c0_i32 = arith.constant 0 : i32
    %c0_i32_0 = arith.constant 0 : i32
    return %arg0, %c0_i32 : i32, i32
  }
}

</mosaic_0001>

<llo_original>
// kernel: tpu_custom_call.1
$region0: #{tpu_custom_call.1}
  #allocation0 [shape = 'u32[]', space=smem, size = 0x4, offset = 0x4, fixed_abs, tag = 'smem constant byte address 0x4 - core index']
  #allocation1 [shape = 'u32[144,128]{1,0:T(1,128)}', space=vmem, size = 0x12000, scoped, tag = 'internal scratch']
  %s0 = inlined_call_operand.vmem [shape: s32[16,1], index: 0, kind: input, shape index: {}]
  %s1 = inlined_call_operand.vmem [shape: f32[16,5], index: 1, kind: output, shape index: {}]
  %s2 = sld [smem:[#allocation0]]
  $region14: #{tpu_custom_call.1} parent=0
    _
  %s4 = ssub.s32 1, %s2
  %s5 = scalar_select 0, %s4, %s2
  // Predicated region
  $region2: #{tpu_custom_call.1} parent=0 // pred_check
    _
  $region3: #{tpu_custom_call.1} parent=0 // pred_check_branch
    %7 = sbr.rel (0) target = $region5
  $region4: #{tpu_custom_call.1} parent=0 // pred_region
    _
  $region5: #{tpu_custom_call.1} parent=0 // pred_fallthru
    _
  %v8 = vlaneseq
  %v9 = vand.u32 %v8, 127
  %v10 = vld [vmem:[%s0] sm:$0xff]
  %v11 = vld [vmem:[%s0 + $0x8] sm:$0xff]
  %12 = vset.pattern.permute.xlu0 0
  %13 = vperm.xlu0 %12, %v10
  %v14 = vpop.permute.xlu0 %13
  %15 = vset.pattern.permute.xlu0 0
  %16 = vperm.xlu0 %15, %v11
  %v17 = vpop.permute.xlu0 %16
  %vm18 = vcmp.eq.s32.totalorder %v14, %v9
  %vm19 = vcmp.eq.s32.totalorder %v17, %v9
  %v20 = vsel %vm18, 1, 0
  %v21 = vsel %vm19, 1, 0
  %v22 = vcvt.s32.f32 %v20
  %v23 = vcvt.s32.f32 %v21
  %vm24 = vcmask 39936
  %25 = vst.msk [vmem:[%s1] sm:$0xff] %vm24, %v22
  %26 = vst.msk [vmem:[%s1 + $0x8] sm:$0xff] %vm24, %v23
  // Predicated region
  $region6: #{tpu_custom_call.1} parent=0 // pred_check
    _
  $region7: #{tpu_custom_call.1} parent=0 // pred_check_branch
    %28 = sbr.rel (0) target = $region9
  $region8: #{tpu_custom_call.1} parent=0 // pred_region
    _
  $region9: #{tpu_custom_call.1} parent=0 // pred_fallthru
    _
  // Predicated region
  $region10: #{tpu_custom_call.1} parent=0 // pred_check
    _
  $region11: #{tpu_custom_call.1} parent=0 // pred_check_branch
    %30 = sbr.rel (0) target = $region13
  $region12: #{tpu_custom_call.1} parent=0 // pred_region
    _
  $region13: #{tpu_custom_call.1} parent=0 // pred_fallthru
    _

</llo_original>
